<compile_context>
chip_gen: v6e
topology: v6e:2x2x1
jax: 0.10.0
libtpu: 0.0.40
codegen_flags: <defaults>
</compile_context>

<pallas_src>
import jax
import jax.numpy as jnp
from jax.experimental import pallas as pl
from jax.experimental.pallas import tpu as pltpu


def _cdiv(a, b):
    return -(-a // b)


def _round_up(x, m):
    return ((x + m - 1) // m) * m


def _adaptive_layerscale_kernel(actions_ref, cond_ref, w_ref, b_ref, out_ref):
    # gamma = cond @ W + b  (f32 accumulate on the MXU), gate = sigmoid(gamma).
    gamma = jnp.dot(cond_ref[...], w_ref[...],
                    preferred_element_type=jnp.float32)
    gamma = gamma + b_ref[...]
    gate = jax.nn.sigmoid(gamma).astype(out_ref.dtype)
    # Gating multiply stays in the streamed dtype; it is free filler under the
    # HBM stall on v5e/v6e/v7x.
    out_ref[...] = actions_ref[...] * gate


def _vmem_budget():
    cap = 64 << 20  # conservative fallback: v7x physical VMEM per TensorCore
    try:
        info = pltpu.get_tpu_info()
        cap = int(getattr(info, "vmem_capacity_bytes", cap))
    except Exception:
        pass
    return (cap * 3) // 4  # leave headroom below physical capacity


def _sublane_granularity(*dtypes):
    # 8 rows for 32-bit, 16 for 16-bit, 32 for 8-bit dtypes.
    g = 8
    for dt in dtypes:
        item = jnp.dtype(dt).itemsize
        if item < 4:
            g = max(g, 8 * (4 // item))
    return g


def _pick_row_tile(m_rows, dim_out, k_dim, a_dtype, c_dtype, o_dtype, w_dtype,
                   vmem_budget, *, target_step_bytes=8 << 20, min_grid_steps=8):
    g = _sublane_granularity(a_dtype, c_dtype, o_dtype)
    a_b = jnp.dtype(a_dtype).itemsize
    c_b = jnp.dtype(c_dtype).itemsize
    o_b = jnp.dtype(o_dtype).itemsize
    w_b = jnp.dtype(w_dtype).itemsize

    # Layout-padded footprints (lanes rounded up to 128). A cond tile with
    # k_dim=16 really occupies tm*128*itemsize per buffer in VMEM.
    dim_p = _round_up(dim_out, 128)
    k_p = _round_up(k_dim, 128)
    # Double-buffered streamed tiles + f32 gamma/gate temporaries.
    per_row = 2 * (dim_p * a_b + k_p * c_b + dim_p * o_b) + 8 * dim_p
    # Grid-constant weight + bias (conservatively counted double-buffered).
    resident = 2 * (k_p * dim_p * w_b + 8 * dim_p * 4)
    headroom = 2 << 20
    avail = max(vmem_budget - resident - headroom, per_row * g)
    tm_vmem = max((avail // per_row) // g * g, g)

    # Byte-based target: each grid step should stream several MiB so the
    # ~0.35 us/step pipeline overhead is amortized against the HBM roofline.
    row_stream = dim_out * a_b + k_dim * c_b + dim_out * o_b
    tm_bytes = _round_up(max(target_step_bytes // max(row_stream, 1), 1), g)

    # Keep >= min_grid_steps grid steps so v7x megacore can split the grid
    # and the pipeline has prologue/epilogue overlap.
    tm_grid = max((_cdiv(m_rows, min_grid_steps) // g) * g, g)

    tm = min(tm_vmem, tm_bytes, tm_grid)
    if m_rows >= g:
        tm = max(min(tm, (m_rows // g) * g), g)
    else:
        tm = m_rows  # block == full row extent (always legal)
    return int(tm)


def adaptive_layerscale(actions, cond, weight, bias, *, tm=None):
    """actions: (B, N, dim); cond: (B, N, dim_cond);
    weight: (dim, dim_cond) (torch nn.Linear layout); bias: (dim,)."""
    B, N, dim = actions.shape
    dim_cond = cond.shape[-1]
    M = B * N

    # Lane-dense fold for small dim: pack `fold` logical rows into one
    # 128-lane row; expand the weight to block-diagonal so the kernel stays a
    # plain canonical matmul (no in-kernel reshape).
    fold = 1
    if (dim % 128 != 0) and (dim < 128) and (128 % dim == 0):
        f = 128 // dim
        if M % f == 0 and f * dim_cond <= 2048:
            fold = f

    m_rows = M // fold
    dim_out = dim * fold
    k_dim = dim_cond * fold

    # bf16 streams feed the MXU as bf16 x bf16 with f32 accumulation.
    mat_dtype = jnp.bfloat16 if cond.dtype == jnp.bfloat16 else jnp.float32

    a2 = actions.reshape(m_rows, dim_out)
    c2 = cond.reshape(m_rows, k_dim).astype(mat_dtype)

    w_t = weight.T.astype(mat_dtype)                       # (dim_cond, dim)
    if fold > 1:
        eye = jnp.eye(fold, dtype=mat_dtype)
        # w_mat[j*dc + k, j2*dim + d] = (j == j2) * weight[d, k]
        w_mat = (eye[:, None, :, None] * w_t[None, :, None, :]).reshape(k_dim, dim_out)
        b_mat = jnp.tile(bias.astype(jnp.float32), fold).reshape(1, dim_out)
    else:
        w_mat = w_t
        b_mat = bias.astype(jnp.float32).reshape(1, dim_out)

    vmem_budget = _vmem_budget()
    if tm is None:
        tm = _pick_row_tile(m_rows, dim_out, k_dim,
                            a2.dtype, c2.dtype, actions.dtype, w_mat.dtype,
                            vmem_budget)

    grid = (_cdiv(m_rows, tm),)            # masked tail block if tm does not divide m_rows

    out_bytes = m_rows * dim_out * jnp.dtype(actions.dtype).itemsize
    cost = pl.CostEstimate(
        flops=int(2 * m_rows * k_dim * dim_out),
        transcendentals=int(m_rows * dim_out),
        bytes_accessed=int(a2.size * jnp.dtype(a2.dtype).itemsize
                           + c2.size * jnp.dtype(c2.dtype).itemsize
                           + out_bytes
                           + w_mat.size * jnp.dtype(w_mat.dtype).itemsize
                           + b_mat.size * 4),
    )

    out = pl.pallas_call(
        _adaptive_layerscale_kernel,
        out_shape=jax.ShapeDtypeStruct((m_rows, dim_out), actions.dtype),
        grid=grid,
        in_specs=[
            pl.BlockSpec((tm, dim_out), lambda i: (i, 0)),      # actions tile
            pl.BlockSpec((tm, k_dim), lambda i: (i, 0)),        # cond tile
            pl.BlockSpec((k_dim, dim_out), lambda i: (0, 0)),   # full weight (grid-constant)
            pl.BlockSpec((1, dim_out), lambda i: (0, 0)),       # full bias (grid-constant)
        ],
        out_specs=pl.BlockSpec((tm, dim_out), lambda i: (i, 0)),
        compiler_params=pltpu.CompilerParams(
            dimension_semantics=("parallel",),
            vmem_limit_bytes=int(vmem_budget),
        ),
        cost_estimate=cost,
    )(a2, c2, w_mat, b_mat)

    return out.reshape(B, N, dim)


def _reference(actions, cond, weight, bias):
    gamma = (cond.astype(jnp.float32) @ weight.astype(jnp.float32).T
             + bias.astype(jnp.float32))
    return actions * jax.nn.sigmoid(gamma).astype(actions.dtype)


if __name__ == "__main__":
    key = jax.random.PRNGKey(0)
    k_a, k_c, k_w, k_b = jax.random.split(key, 4)

    batch, seq, dim, dim_cond = 2, 8, 32, 16
    adaln_zero_bias_init_value = -2.0

    actions = jax.random.normal(k_a, (batch, seq, dim), dtype=jnp.float32)
    cond = jax.random.normal(k_c, (batch, seq, dim_cond), dtype=jnp.float32)

    # --- Test 1: exact module init (weight = 0, bias = -2.0) -----------------
    weight0 = jnp.zeros((dim, dim_cond), dtype=jnp.float32)
    bias0 = jnp.full((dim,), adaln_zero_bias_init_value, dtype=jnp.float32)
    out1 = jax.block_until_ready(adaptive_layerscale(actions, cond, weight0, bias0))
    ref1 = _reference(actions, cond, weight0, bias0)
    assert jnp.allclose(out1, ref1, atol=5e-6, rtol=1e-5), "mismatch (init params)"

    # --- Test 2: random weight/bias (matmul orientation + lane-dense fold) ---
    weight = 0.1 * jax.random.normal(k_w, (dim, dim_cond), dtype=jnp.float32)
    bias = jax.random.normal(k_b, (dim,), dtype=jnp.float32)
    out2 = jax.block_until_ready(adaptive_layerscale(actions, cond, weight, bias))
    ref2 = _reference(actions, cond, weight, bias)
    assert jnp.allclose(out2, ref2, atol=1e-5, rtol=1e-5), "mismatch (random params)"

    # --- Test 3: bf16 streams (bf16 x bf16 MXU feed, f32 accumulate) ---------
    a_bf = jax.random.normal(k_a, (2, 16, dim), dtype=jnp.float32).astype(jnp.bfloat16)
    c_bf = jax.random.normal(k_c, (2, 16, dim_cond), dtype=jnp.float32).astype(jnp.bfloat16)
    out3 = jax.block_until_ready(adaptive_layerscale(a_bf, c_bf, weight, bias))
    ref3 = _reference(a_bf.astype(jnp.float32), c_bf.astype(jnp.float32), weight, bias)
    assert jnp.allclose(out3.astype(jnp.float32), ref3, atol=3e-2, rtol=3e-2), \
        "mismatch (bf16 streams)"

    # --- Test 4: ragged row count (M = 21 -> no fold, masked tail block) -----
    a_r = jax.random.normal(k_a, (3, 7, dim), dtype=jnp.float32)
    c_r = jax.random.normal(k_c, (3, 7, dim_cond), dtype=jnp.float32)
    out4 = jax.block_until_ready(adaptive_layerscale(a_r, c_r, weight, bias))
    ref4 = _reference(a_r, c_r, weight, bias)
    assert jnp.allclose(out4, ref4, atol=1e-5, rtol=1e-5), "mismatch (ragged rows)"

    print("KERNEL_OK")
</pallas_src>

<mosaic_0001>
module attributes {stable_mosaic.version = 11 : i64} {
  func.func @_adaptive_layerscale_kernel(%arg0: i32, %arg1: memref<4x128xf32, #tpu.memory_space<vmem>>, %arg2: memref<4x64xf32, #tpu.memory_space<vmem>>, %arg3: memref<64x128xf32, #tpu.memory_space<vmem>>, %arg4: memref<1x128xf32, #tpu.memory_space<vmem>>, %arg5: memref<4x128xf32, #tpu.memory_space<vmem>>) attributes {dimension_semantics = [#tpu.dimension_semantics<parallel>], iteration_bounds = array<i64: 1>, scalar_prefetch = 0 : i64, scratch_operands = 0 : i64, tpu.core_type = #tpu.core_type<tc>, window_params = [{transform_indices = @transform_0, window_bounds = array<i64: 4, 128>}, {transform_indices = @transform_1, window_bounds = array<i64: 4, 64>}, {pipeline_mode = #tpu.pipeline_mode<synchronous>, transform_indices = @transform_2, window_bounds = array<i64: 64, 128>}, {pipeline_mode = #tpu.pipeline_mode<synchronous>, transform_indices = @transform_3, window_bounds = array<i64: 1, 128>}, {transform_indices = @transform_4, window_bounds = array<i64: 4, 128>}]} {
    %c0 = arith.constant 0 : index
    %c0_0 = arith.constant 0 : index
    %0 = vector.load %arg2[%c0, %c0_0] : memref<4x64xf32, #tpu.memory_space<vmem>>, vector<4x64xf32>
    %c0_1 = arith.constant 0 : index
    %c0_2 = arith.constant 0 : index
    %1 = vector.load %arg3[%c0_1, %c0_2] : memref<64x128xf32, #tpu.memory_space<vmem>>, vector<64x128xf32>
    %cst = arith.constant dense<0.000000e+00> : vector<4x128xf32>
    %2 = tpu.matmul %0, %1, %cst {dimension_numbers = #tpu.dot_dimension_numbers<[1], [0], [0], [1], [0, 0, 1, 1], [], []>} : vector<4x64xf32>, vector<64x128xf32>, vector<4x128xf32> -> vector<4x128xf32>
    %c0_3 = arith.constant 0 : index
    %c0_4 = arith.constant 0 : index
    %3 = vector.load %arg4[%c0_3, %c0_4] : memref<1x128xf32, #tpu.memory_space<vmem>>, vector<1x128xf32>
    %4 = vector.broadcast %3 : vector<1x128xf32> to vector<4x128xf32>
    %5 = arith.addf %2, %4 : vector<4x128xf32>
    %6 = arith.negf %5 : vector<4x128xf32>
    %7 = math.exp %6 : vector<4x128xf32>
    %cst_5 = arith.constant 1.000000e+00 : f32
    %8 = vector.broadcast %cst_5 : f32 to vector<4x128xf32>
    %9 = arith.addf %8, %7 : vector<4x128xf32>
    %10 = arith.divf %8, %9 : vector<4x128xf32>
    %c0_6 = arith.constant 0 : index
    %c0_7 = arith.constant 0 : index
    %11 = vector.load %arg1[%c0_6, %c0_7] : memref<4x128xf32, #tpu.memory_space<vmem>>, vector<4x128xf32>
    %12 = arith.mulf %11, %10 : vector<4x128xf32>
    %c0_8 = arith.constant 0 : index
    %c0_9 = arith.constant 0 : index
    %13 = vector.load %arg5[%c0_8, %c0_9] : memref<4x128xf32, #tpu.memory_space<vmem>>, vector<4x128xf32>
    tpu.vector_store %arg5[%c0_8, %c0_9], %12 {strides = array<i32>} : memref<4x128xf32, #tpu.memory_space<vmem>>, vector<4x128xf32>,
    return
  }
  func.func @transform_0(%arg0: i32) -> (i32, i32) {
    %c0_i32 = arith.constant 0 : i32
    %c0_i32_0 = arith.constant 0 : i32
    return %arg0, %c0_i32 : i32, i32
  }
  func.func @transform_1(%arg0: i32) -> (i32, i32) {
    %c0_i32 = arith.constant 0 : i32
    %c0_i32_0 = arith.constant 0 : i32
    return %arg0, %c0_i32 : i32, i32
  }
  func.func @transform_2(%arg0: i32) -> (i32, i32) {
    %c0_i32 = arith.constant 0 : i32
    %c0_i32_0 = arith.constant 0 : i32
    %c0_i32_1 = arith.constant 0 : i32
    return %c0_i32, %c0_i32_0 : i32, i32
  }
  func.func @transform_3(%arg0: i32) -> (i32, i32) {
    %c0_i32 = arith.constant 0 : i32
    %c0_i32_0 = arith.constant 0 : i32
    %c0_i32_1 = arith.constant 0 : i32
    return %c0_i32, %c0_i32_0 : i32, i32
  }
  func.func @transform_4(%arg0: i32) -> (i32, i32) {
    %c0_i32 = arith.constant 0 : i32
    %c0_i32_0 = arith.constant 0 : i32
    return %arg0, %c0_i32 : i32, i32
  }
}

</mosaic_0001>

<llo_original>
// kernel: tpu_custom_call.1
$region0: #{tpu_custom_call.1}
  #allocation0 [shape = 'u32[]', space=smem, size = 0x4, offset = 0x4, fixed_abs, tag = 'smem constant byte address 0x4 - core index']
  #allocation1 [shape = 'u32[144,128]{1,0:T(1,128)}', space=vmem, size = 0x12000, scoped, tag = 'internal scratch']
  %s0 = inlined_call_operand.hbm [shape: f32[4,128], index: 0, kind: input, shape index: {}]
  %s1 = inlined_call_operand.hbm [shape: f32[4,64], index: 1, kind: input, shape index: {}]
  %s2 = inlined_call_operand.hbm [shape: f32[64,128], index: 2, kind: input, shape index: {}]
  %s3 = inlined_call_operand.vmem [shape: f32[1,128], index: 3, kind: input, shape index: {}]
  %s4 = inlined_call_operand.hbm [shape: f32[4,128], index: 4, kind: output, shape index: {}]
  %s5 = sld [smem:[#allocation0]]
  $region38: #{tpu_custom_call.1} parent=0
    _
  %s7 = ssub.s32 1, %s5
  %s8 = scalar_select 0, %s7, %s5
  $region1: #{tpu_custom_call.1} parent=0
    #allocation2 [shape = 'u8[2048]{0}', space=vmem, size = 0x800, scoped, tag = 'input window, operand 0, single buffered']
    #allocation3 [shape = 's32[1]{0}', space=sflag, size = 0x4, scoped, tag = 'scoped memory for tpu_custom_call.1']
    #allocation4 [shape = 's32[1]{0}', space=sflag, size = 0x4, scoped, tag = 'scoped memory for tpu_custom_call.1']
    #allocation5 [shape = 'u8[2048]{0}', space=vmem, size = 0x800, scoped, tag = 'input window, operand 1, single buffered']
    #allocation6 [shape = 's32[1]{0}', space=sflag, size = 0x4, scoped, tag = 'scoped memory for tpu_custom_call.1']
    #allocation7 [shape = 'u8[32768]{0}', space=vmem, size = 0x8000, scoped, tag = 'input window, operand 2, single buffered']
    #allocation8 [shape = 'u8[2048]{0}', space=vmem, size = 0x800, scoped, tag = 'output window, operand 0, single buffered']
    %9 = vsyncpa [#allocation3], 0
    %10 = vsyncpa [#allocation6], 0
    %11 = vsyncpa [#allocation4], 0
    // Predicated region
    $region2: #{tpu_custom_call.1} parent=1 // pred_check
      _
    $region3: #{tpu_custom_call.1} parent=1 // pred_check_branch
      %13 = sbr.rel (0) target = $region5
    $region4: #{tpu_custom_call.1} parent=1 // pred_region
      %s15 = ssub.s32 64, 64
      %16 = vsyncadd [#allocation3], %s15
      %s18 = sshll.u32 [#allocation2], 4
      %s19 = int_to_ptr.vmem [resolvable:$true] %s18
      %21 = dma.hbm_to_vmem [thread:$0]  %s0, 64, %s19, [#allocation3]
    $region5: #{tpu_custom_call.1} parent=1 // pred_fallthru
      _
    // Predicated region
    $region6: #{tpu_custom_call.1} parent=1 // pred_check
      _
    $region7: #{tpu_custom_call.1} parent=1 // pred_check_branch
      %23 = sbr.rel (0) target = $region9
    $region8: #{tpu_custom_call.1} parent=1 // pred_region
      %s25 = ssub.s32 64, 64
      %26 = vsyncadd [#allocation6], %s25
      %s28 = sshll.u32 [#allocation5], 4
      %s29 = int_to_ptr.vmem [resolvable:$true] %s28
      %31 = dma.hbm_to_vmem [thread:$0]  %s1, 64, %s29, [#allocation6]
    $region9: #{tpu_custom_call.1} parent=1 // pred_fallthru
      _
    // Predicated region
    $region10: #{tpu_custom_call.1} parent=1 // pred_check
      _
    $region11: #{tpu_custom_call.1} parent=1 // pred_check_branch
      %33 = sbr.rel (0) target = $region13
    $region12: #{tpu_custom_call.1} parent=1 // pred_region
      %s35 = ssub.s32 1024, 1024
      %36 = vsyncadd [#allocation6], %s35
      %s37 = sshll.u32 [#allocation7], 4
      %s38 = int_to_ptr.vmem [resolvable:$true] %s37
      %43 = dma.hbm_to_vmem [thread:$0]  %s2, 1024, %s38, [#allocation6], 128, 128, 8
    $region13: #{tpu_custom_call.1} parent=1 // pred_fallthru
      _
    // Predicated region
    $region14: #{tpu_custom_call.1} parent=1 // pred_check
      _
    $region15: #{tpu_custom_call.1} parent=1 // pred_check_branch
      %45 = sbr.rel (0) target = $region17
    $region16: #{tpu_custom_call.1} parent=1 // pred_region
      _
    $region17: #{tpu_custom_call.1} parent=1 // pred_fallthru
      _
    // Predicated region
    $region18: #{tpu_custom_call.1} parent=1 // pred_check
      _
    $region19: #{tpu_custom_call.1} parent=1 // pred_check_branch
      %47 = sbr.rel (0) target = $region21
    $region20: #{tpu_custom_call.1} parent=1 // pred_region
      %48 = dma.done [#allocation3], 64
    $region21: #{tpu_custom_call.1} parent=1 // pred_fallthru
      _
    // Predicated region
    $region22: #{tpu_custom_call.1} parent=1 // pred_check
      _
    $region23: #{tpu_custom_call.1} parent=1 // pred_check_branch
      %50 = sbr.rel (0) target = $region25
    $region24: #{tpu_custom_call.1} parent=1 // pred_region
      %51 = dma.done [#allocation6], 64
    $region25: #{tpu_custom_call.1} parent=1 // pred_fallthru
      _
    // Predicated region
    $region26: #{tpu_custom_call.1} parent=1 // pred_check
      _
    $region27: #{tpu_custom_call.1} parent=1 // pred_check_branch
      %53 = sbr.rel (0) target = $region29
    $region28: #{tpu_custom_call.1} parent=1 // pred_region
      %54 = dma.done [#allocation6], 1024
    $region29: #{tpu_custom_call.1} parent=1 // pred_fallthru
      _
    %v55 = vld [vmem:[#allocation5] sm:$0xf]
    %v56 = vld [vmem:[#allocation7] sm:$0xff]
    %v57 = vld [vmem:[#allocation7 + $0x8] sm:$0xff]
    %v58 = vld [vmem:[#allocation7 + $0x10] sm:$0xff]
    %v59 = vld [vmem:[#allocation7 + $0x18] sm:$0xff]
    %v60 = vld [vmem:[#allocation7 + $0x20] sm:$0xff]
    %v61 = vld [vmem:[#allocation7 + $0x28] sm:$0xff]
    %v62 = vld [vmem:[#allocation7 + $0x30] sm:$0xff]
    %v63 = vld [vmem:[#allocation7 + $0x38] sm:$0xff]
    %v64 = vld [vmem:[%s3] sm:$0x1]
    %v66 = vlaneseq
    %v67 = vshrl.u32 %v66, 7
    %v68 = vsub.s32 0, %v67
    %v69 = vrot.slane %v64, %v68
    %vm71 = vcmask 523264
    %v73 = vsel %vm71, %v55, 0
    %75 = vmatprep.subr.mxu0 0.0
    %76 = vmatpush1.msra.mxu0 0.0
    %77 = vmatprep.subr.mxu0 0.0
    %78 = vmatpush1.msra.mxu0 0.0
    %79 = vmatprep.subr.mxu0 0.0
    %80 = vmatpush1.msra.mxu0 0.0
    %81 = vmatprep.subr.mxu0 0.0
    %82 = vmatpush1.msra.mxu0 0.0
    %83 = vmatprep.subr.mxu0 0.0
    %84 = vmatpush1.msra.mxu0 0.0
    %85 = vmatprep.subr.mxu0 0.0
    %86 = vmatpush1.msra.mxu0 0.0
    %87 = vmatprep.subr.mxu0 0.0
    %88 = vmatpush1.msra.mxu0 0.0
    %89 = vmatprep.subr.mxu0 0.0
    %90 = vmatpush1.msra.mxu0 0.0
    %91 = vmatprep.subr.mxu0 0.0
    %92 = vmatpush1.msra.mxu0 %v63
    %93 = vmatprep.subr.mxu0 0.0
    %94 = vmatpush1.msra.mxu0 %v62
    %95 = vmatprep.subr.mxu0 0.0
    %96 = vmatpush1.msra.mxu0 %v61
    %97 = vmatprep.subr.mxu0 0.0
    %98 = vmatpush1.msra.mxu0 %v60
    %99 = vmatprep.subr.mxu0 0.0
    %100 = vmatpush1.msra.mxu0 %v59
    %101 = vmatprep.subr.mxu0 0.0
    %102 = vmatpush1.msra.mxu0 %v58
    %103 = vmatprep.subr.mxu0 0.0
    %104 = vmatpush1.msra.mxu0 %v57
    %105 = vmatprep.subr.mxu0 0.0
    %106 = vmatpush1.msra.mxu0 %v56
    %107 = vmatprep.subr.mxu0 0.0
    %108 = vmatpush2.msra.mxu0 0.0
    %109 = vmatprep.subr.mxu0 0.0
    %110 = vmatpush2.msra.mxu0 0.0
    %111 = vmatprep.subr.mxu0 0.0
    %112 = vmatpush2.msra.mxu0 0.0
    %113 = vmatprep.subr.mxu0 0.0
    %114 = vmatpush2.msra.mxu0 0.0
    %115 = vmatprep.subr.mxu0 0.0
    %116 = vmatpush2.msra.mxu0 0.0
    %117 = vmatprep.subr.mxu0 0.0
    %118 = vmatpush2.msra.mxu0 0.0
    %119 = vmatprep.subr.mxu0 0.0
    %120 = vmatpush2.msra.mxu0 0.0
    %121 = vmatprep.subr.mxu0 0.0
    %122 = vmatpush2.msra.mxu0 0.0
    %123 = vmatprep.subr.mxu0 0.0
    %124 = vmatpush2.msra.mxu0 0.0
    %125 = vmatprep.subr.mxu0 0.0
    %126 = vmatpush2.msra.mxu0 0.0
    %127 = vmatprep.subr.mxu0 0.0
    %128 = vmatpush2.msra.mxu0 0.0
    %129 = vmatprep.subr.mxu0 0.0
    %130 = vmatpush2.msra.mxu0 0.0
    %131 = vmatprep.subr.mxu0 0.0
    %132 = vmatpush2.msra.mxu0 0.0
    %133 = vmatprep.subr.mxu0 0.0
    %134 = vmatpush2.msra.mxu0 0.0
    %135 = vmatprep.subr.mxu0 0.0
    %136 = vmatpush2.msra.mxu0 0.0
    %137 = vmatprep.subr.mxu0 0.0
    %138 = vmatpush2.msra.mxu0 0.0
    %139 = vmatprep.mubr.f32.mxu0 0.0
    %140 = vmatmul.mubr.f32.gmra.mxu0 %v73
    %v141 = vpop.f32.mrf.mxu0
    %v142 = vadd.f32 %v69, %v141
    %v143 = vpop.f32.mrf.mxu0
    %144 = vdwg.mxu0
    %v145 = vxor.u32 %v142, 2147483648
    %v146 = vmul.f32 %v145, 1.442695
    %v147 = vpow.pop %v146
    %v148 = vadd.f32 %v147, 1.0
    %v149 = vrcp.pop %v148
    %v150 = vmul.f32 1.0, %v149
    %v151 = vld [vmem:[#allocation2] sm:$0xf]
    %v152 = vmul.f32 %v151, %v150
    %153 = vst [vmem:[#allocation8] sm:$0xf] %v152
    // Predicated region
    $region30: #{tpu_custom_call.1} parent=1 // pred_check
      _
    $region31: #{tpu_custom_call.1} parent=1 // pred_check_branch
      %155 = sbr.rel (0) target = $region33
    $region32: #{tpu_custom_call.1} parent=1 // pred_region
      %s157 = ssub.s32 64, 64
      %158 = vsyncadd [#allocation4], %s157
      %s160 = sshll.u32 [#allocation8], 4
      %s161 = int_to_ptr.vmem [resolvable:$true] %s160
      %163 = dma.vmem_to_hbm [thread:$0]  %s161, 64, %s4, [#allocation4]
    $region33: #{tpu_custom_call.1} parent=1 // pred_fallthru
      _
    // Predicated region
    $region34: #{tpu_custom_call.1} parent=1 // pred_check
      _
    $region35: #{tpu_custom_call.1} parent=1 // pred_check_branch
      %165 = sbr.rel (0) target = $region37
    $region36: #{tpu_custom_call.1} parent=1 // pred_region
      %166 = dma.done [#allocation4], 64
    $region37: #{tpu_custom_call.1} parent=1 // pred_fallthru
      _
    %167 = vsyncpa [#allocation3], 1
    %168 = vsyncpa [#allocation6], 1
    %169 = vsyncpa [#allocation4], 1

</llo_original>
